<compile_context>
chip_gen: v6e
topology: v6e:2x2x1
jax: 0.10.0
libtpu: 0.0.40
codegen_flags: <defaults>
</compile_context>

<pallas_src>
import functools

import jax
import jax.numpy as jnp
from jax.experimental import pallas as pl
from jax.experimental.pallas import tpu as pltpu

LANE = 128
SUB = 8


def _rup(x, m):
    return ((x + m - 1) // m) * m


def _pad2(x, rows, cols):
    return jnp.pad(x, ((0, rows - x.shape[0]), (0, cols - x.shape[1])))


# ----------------------------------------------------------------------------
# Kernel 1: gridded segment pooling
#   out[B,F] = (pool[B,N] @ vecs[N,F]) * inv_size[B,1]
# Grid = (B tiles, F tiles, K tiles); K (the node/reduction axis) is last and
# accumulated into a VMEM f32 scratch.  Covers tree+inter mean pooling (fused
# along F) and anchor sum pooling (inv_size = 1).
# ----------------------------------------------------------------------------
def _segment_pool_kernel(pool_ref, vecs_ref, inv_ref, out_ref, acc_ref):
    @pl.when(pl.program_id(2) == 0)
    def _():
        acc_ref[...] = jnp.zeros_like(acc_ref)

    acc_ref[...] += jnp.dot(pool_ref[...], vecs_ref[...],
                            preferred_element_type=jnp.float32)

    @pl.when(pl.program_id(2) == pl.num_programs(2) - 1)
    def _():
        out_ref[...] = acc_ref[...] * inv_ref[...]


def segment_pool(pool, vecs, inv_size, *, tb=256, tf=512, tk=256,
                 compute_dtype=jnp.bfloat16):
    """pool:[B,N], vecs:[N,F], inv_size:[B,1] -> padded [Bp,Fp] f32."""
    B, N = pool.shape
    _, F = vecs.shape
    tb = min(_rup(B, SUB), tb)
    tf = min(_rup(F, LANE), tf)
    tk = min(_rup(N, LANE), tk)
    Bp, Fp, Np = _rup(B, tb), _rup(F, tf), _rup(N, tk)

    # bf16 MXU operands: selector is exactly representable 0/1, node features
    # lose <= bf16 eps; halves the HBM->VMEM bytes of the dominant [N,F] DMA.
    pool_p = _pad2(pool, Bp, Np).astype(compute_dtype)
    vecs_p = _pad2(vecs, Np, Fp).astype(compute_dtype)
    inv_p = jnp.pad(inv_size.astype(jnp.float32),
                    ((0, Bp - B), (0, 0)), constant_values=1.0)

    in_item = jnp.dtype(compute_dtype).itemsize
    vmem_need = (2 * (tb * tk + tk * tf) * in_item   # double-buffered inputs
                 + 2 * tb * 4                        # inv_size
                 + 2 * tb * tf * 4                   # double-buffered output
                 + tb * tf * 4)                      # accumulator scratch
    vmem_limit = int(min(max(2 * vmem_need, 8 << 20), 32 << 20))

    grid = (Bp // tb, Fp // tf, Np // tk)
    return pl.pallas_call(
        _segment_pool_kernel,
        out_shape=jax.ShapeDtypeStruct((Bp, Fp), jnp.float32),
        grid_spec=pltpu.PrefetchScalarGridSpec(
            num_scalar_prefetch=0,
            grid=grid,
            in_specs=[
                pl.BlockSpec((tb, tk), lambda b, f, k: (b, k)),
                pl.BlockSpec((tk, tf), lambda b, f, k: (k, f)),
                pl.BlockSpec((tb, 1), lambda b, f, k: (b, 0)),
            ],
            out_specs=pl.BlockSpec((tb, tf), lambda b, f, k: (b, f)),
            scratch_shapes=[pltpu.VMEM((tb, tf), jnp.float32)],
        ),
        compiler_params=pltpu.CompilerParams(
            dimension_semantics=("parallel", "parallel", "arbitrary"),
            vmem_limit_bytes=vmem_limit,
        ),
    )(pool_p, vecs_p, inv_p)


# ----------------------------------------------------------------------------
# Kernel 2: fused rsample for BOTH tree and graph branches
#   zmv = x @ W_packed + b_packed          (mean | var packed along lanes)
#   tree branch: root @ W_root + pooled_ti @ W_ti  (replaces host-side concat)
#   z_log_var = -|var half|,  kl = -0.5*sum(masked terms)/B
#   z = mean + exp(log_var/2) * eps
# KL is written as a lane-dense (8,128) slab (unmasked vst; wrapper reads [0,0]).
# ----------------------------------------------------------------------------
def _rsample_fused_kernel(root_ref, ti_ref, g_ref, wtr_ref, wti_ref, bt_ref,
                          wg_ref, bg_ref, epst_ref, epsg_ref, mask_ref,
                          tz_ref, gz_ref, kl_ref, *, inv_b, l_pad):
    mask = mask_ref[...]                                   # [Bp,1] 1 = real row

    # tree branch (root / tree / inter row-blocked weights -> MXU f32 acc)
    zmv_t = (jnp.dot(root_ref[...], wtr_ref[...],
                     preferred_element_type=jnp.float32)
             + jnp.dot(ti_ref[...], wti_ref[...],
                       preferred_element_type=jnp.float32)
             + bt_ref[...])
    zm_t = zmv_t[:, :l_pad]
    zlv_t = -jnp.abs(zmv_t[:, l_pad:])

    # graph branch
    zmv_g = (jnp.dot(g_ref[...], wg_ref[...],
                     preferred_element_type=jnp.float32)
             + bg_ref[...])
    zm_g = zmv_g[:, :l_pad]
    zlv_g = -jnp.abs(zmv_g[:, l_pad:])

    # KL: padded lanes contribute exactly 0 (zero weight cols / bias);
    # padded rows are removed with the row mask.
    kl_t = jnp.sum((1.0 + zlv_t - zm_t * zm_t - jnp.exp(zlv_t)) * mask)
    kl_g = jnp.sum((1.0 + zlv_g - zm_g * zm_g - jnp.exp(zlv_g)) * mask)
    kl = -0.5 * (kl_t + kl_g) * inv_b

    tz_ref[...] = zm_t + jnp.exp(zlv_t * 0.5) * epst_ref[...]
    gz_ref[...] = zm_g + jnp.exp(zlv_g * 0.5) * epsg_ref[...]
    kl_ref[...] = jnp.zeros_like(kl_ref) + kl              # lane-dense scalar slab


def rsample_fused(root_p, ti_p, g_p, wt_root, wt_ti, bt, wg, bg,
                  eps_t, eps_g, row_mask, *, n_real):
    Bp = root_p.shape[0]
    Lp = wt_root.shape[1] // 2
    kernel = functools.partial(_rsample_fused_kernel,
                               inv_b=1.0 / float(n_real), l_pad=Lp)

    def full2(shape):
        return pl.BlockSpec(shape, lambda: (0, 0))

    ins = (root_p, ti_p, g_p, wt_root, wt_ti, bt, wg, bg, eps_t, eps_g, row_mask)
    tz, gz, kl_slab = pl.pallas_call(
        kernel,
        out_shape=(jax.ShapeDtypeStruct((Bp, Lp), jnp.float32),
                   jax.ShapeDtypeStruct((Bp, Lp), jnp.float32),
                   jax.ShapeDtypeStruct((SUB, LANE), jnp.float32)),
        in_specs=[full2(x.shape) for x in ins],
        out_specs=(full2((Bp, Lp)), full2((Bp, Lp)), full2((SUB, LANE))),
        compiler_params=pltpu.CompilerParams(vmem_limit_bytes=32 << 20),
    )(*ins)
    return tz, gz, kl_slab[0, 0]


# ----------------------------------------------------------------------------
# Parameter packing / forward wrapper (glue in plain JAX, hot path in kernels)
# ----------------------------------------------------------------------------
def _pack_mean_var(wm, wv, bm, bv, l_pad):
    din, L = wm.shape
    w = jnp.zeros((din, 2 * l_pad), jnp.float32)
    w = w.at[:, :L].set(wm).at[:, l_pad:l_pad + L].set(wv)
    b = jnp.zeros((1, 2 * l_pad), jnp.float32)
    b = b.at[:, :L].set(bm).at[:, l_pad:l_pad + L].set(bv)
    return w, b


def hiervae_forward(params, enc_outputs, tree_scopes, graph_scopes,
                    anchor_ids, eps_tree, eps_graph, beta):
    root_vecs, tree_node_vecs, inter_node_vecs, graph_node_vecs = enc_outputs
    B, H = root_vecs.shape
    Nt = tree_node_vecs.shape[0]
    Ng = graph_node_vecs.shape[0]
    L = params["T_mean_w"].shape[1]

    B_pad = _rup(B, SUB)
    H_pad = _rup(H, LANE)
    L_pad = _rup(L, LANE)

    # --- selector matrices (parameter-free glue; dense one-hot rows) ---------
    # TODO(synk): for production-sized N (thousands of atoms) replace the dense
    # selector matmul with PrefetchScalarGridSpec scopes + pl.ds(start, len)
    # slicing; dense form kept here since it is exact and MXU-friendly at small N.
    node_idx_t = jnp.arange(Nt)[None, :]
    st_t = tree_scopes[:, 0:1].astype(jnp.int32)
    le_t = tree_scopes[:, 1:2].astype(jnp.int32)
    tree_pool = ((node_idx_t >= st_t) & (node_idx_t < st_t + le_t)
                 ).astype(jnp.float32)                           # [B, Nt]
    inv_tree_size = 1.0 / jnp.maximum(le_t, 1).astype(jnp.float32)  # clamped

    node_idx_g = jnp.arange(Ng)[None, :]
    st_g = graph_scopes[:, 0:1].astype(jnp.int32)
    le_g = graph_scopes[:, 1:2].astype(jnp.int32)
    in_seg = (node_idx_g >= st_g) & (node_idx_g < st_g + le_g)
    is_anchor = jnp.zeros((Ng,), jnp.bool_).at[anchor_ids].set(True)[None, :]
    anchor_pool = (in_seg & is_anchor).astype(jnp.float32)       # [B, Ng]
    has_anchor = anchor_pool.sum(axis=1, keepdims=True) > 0
    fallback = jnp.zeros((B, Ng), jnp.float32).at[:, 0].set(1.0)
    anchor_pool = jnp.where(has_anchor, anchor_pool, fallback)
    ones_size = jnp.ones((B, 1), jnp.float32)                    # anchor = sum

    # --- fused tree+inter pooling: one selector DMA, one MXU matmul ----------
    vecs_ti = jnp.concatenate(
        [_pad2(tree_node_vecs, Nt, H_pad), _pad2(inter_node_vecs, Nt, H_pad)],
        axis=1)                                                  # [Nt, 2*H_pad]
    pooled_ti = segment_pool(tree_pool, vecs_ti,
                             inv_tree_size)[:B_pad, :2 * H_pad]
    graph_pooled = segment_pool(anchor_pool, _pad2(graph_node_vecs, Ng, H_pad),
                                ones_size)[:B_pad, :H_pad]

    # --- pack mean|var weights; split tree weight into root / (tree,inter) ---
    wT, bT = _pack_mean_var(params["T_mean_w"], params["T_var_w"],
                            params["T_mean_b"], params["T_var_b"], L_pad)
    wt_root = _pad2(wT[:H], H_pad, 2 * L_pad)
    wt_ti = jnp.concatenate([_pad2(wT[H:2 * H], H_pad, 2 * L_pad),
                             _pad2(wT[2 * H:3 * H], H_pad, 2 * L_pad)], axis=0)
    wG, bG = _pack_mean_var(params["G_mean_w"], params["G_var_w"],
                            params["G_mean_b"], params["G_var_b"], L_pad)
    wg = _pad2(wG, H_pad, 2 * L_pad)

    root_p = _pad2(root_vecs, B_pad, H_pad)
    eps_t_p = _pad2(eps_tree, B_pad, L_pad)
    eps_g_p = _pad2(eps_graph, B_pad, L_pad)
    row_mask = (jnp.arange(B_pad) < B).astype(jnp.float32)[:, None]

    tz_p, gz_p, kl_div = rsample_fused(
        root_p, pooled_ti, graph_pooled, wt_root, wt_ti, bT, wg, bG,
        eps_t_p, eps_g_p, row_mask, n_real=B)

    tree_z = tz_p[:B, :L]
    graph_z = gz_p[:B, :L]

    # TODO(synk): HierMPNDecoder((tree_z, tree_z, graph_z), ...) is an external
    # module not provided; reconstruction loss / accuracies omitted.
    recon_loss = jnp.float32(0.0)
    total_loss = recon_loss + beta * kl_div
    return total_loss, kl_div, tree_z, graph_z


# ----------------------------------------------------------------------------
if __name__ == "__main__":
    key = jax.random.PRNGKey(0)

    B, H, L = 2, 32, 16      # batch, hidden_size, latent_size
    Nt, Ng = 8, 16           # total tree nodes / graph atoms across the batch
    ks = jax.random.split(key, 16)

    root_vecs = jax.random.normal(ks[0], (B, H), jnp.float32)
    tree_node_vecs = jax.random.normal(ks[1], (Nt, H), jnp.float32)
    inter_node_vecs = jax.random.normal(ks[2], (Nt, H), jnp.float32)
    graph_node_vecs = jax.random.normal(ks[3], (Ng, H), jnp.float32)

    tree_scopes = jnp.array([[0, 3], [3, 5]], jnp.int32)
    graph_scopes = jnp.array([[0, 7], [7, 9]], jnp.int32)
    anchor_ids = jnp.array([1, 4, 9, 12], jnp.int32)

    def lin(k, din, dout):
        kw, kb = jax.random.split(k)
        bound = 1.0 / jnp.sqrt(din)
        w = jax.random.uniform(kw, (din, dout), jnp.float32, -bound, bound)
        b = jax.random.uniform(kb, (1, dout), jnp.float32, -bound, bound)
        return w, b

    Tm_w, Tm_b = lin(ks[4], 3 * H, L)   # see 2*H vs 3*H note above
    Tv_w, Tv_b = lin(ks[5], 3 * H, L)
    Gm_w, Gm_b = lin(ks[6], H, L)
    Gv_w, Gv_b = lin(ks[7], H, L)
    params = dict(T_mean_w=Tm_w, T_mean_b=Tm_b, T_var_w=Tv_w, T_var_b=Tv_b,
                  G_mean_w=Gm_w, G_mean_b=Gm_b, G_var_w=Gv_w, G_var_b=Gv_b)

    eps_tree = jax.random.normal(ks[8], (B, L), jnp.float32)
    eps_graph = jax.random.normal(ks[9], (B, L), jnp.float32)
    beta = jnp.float32(0.1)

    total_loss, kl_div, tree_z, graph_z = hiervae_forward(
        params,
        (root_vecs, tree_node_vecs, inter_node_vecs, graph_node_vecs),
        tree_scopes, graph_scopes, anchor_ids, eps_tree, eps_graph, beta)
    jax.block_until_ready((total_loss, kl_div, tree_z, graph_z))

    # pure-JAX reference (mirrors the bf16 pooling cast used by the kernel)
    def ref():
        bf = jnp.bfloat16
        idx_t = jnp.arange(Nt)[None, :]
        pool = ((idx_t >= tree_scopes[:, :1]) &
                (idx_t < tree_scopes[:, :1] + tree_scopes[:, 1:2])
                ).astype(jnp.float32)
        size = jnp.maximum(tree_scopes[:, 1:2], 1).astype(jnp.float32)
        tp = jnp.dot(pool.astype(bf), tree_node_vecs.astype(bf),
                     preferred_element_type=jnp.float32) / size
        ip = jnp.dot(pool.astype(bf), inter_node_vecs.astype(bf),
                     preferred_element_type=jnp.float32) / size
        cat = jnp.concatenate([root_vecs, tp, ip], axis=-1)
        zm = cat @ Tm_w + Tm_b
        lv = -jnp.abs(cat @ Tv_w + Tv_b)
        kl_t = -0.5 * jnp.sum(1.0 + lv - zm * zm - jnp.exp(lv)) / B
        zt = zm + jnp.exp(lv / 2) * eps_tree

        idx_g = jnp.arange(Ng)[None, :]
        in_seg = ((idx_g >= graph_scopes[:, :1]) &
                  (idx_g < graph_scopes[:, :1] + graph_scopes[:, 1:2]))
        is_anchor = jnp.zeros((Ng,), jnp.bool_).at[anchor_ids].set(True)[None, :]
        apool = (in_seg & is_anchor).astype(jnp.float32)
        has = apool.sum(1, keepdims=True) > 0
        apool = jnp.where(has, apool,
                          jnp.zeros((B, Ng), jnp.float32).at[:, 0].set(1.0))
        gv = jnp.dot(apool.astype(bf), graph_node_vecs.astype(bf),
                     preferred_element_type=jnp.float32)
        gm = gv @ Gm_w + Gm_b
        glv = -jnp.abs(gv @ Gv_w + Gv_b)
        kl_g = -0.5 * jnp.sum(1.0 + glv - gm * gm - jnp.exp(glv)) / B
        zg = gm + jnp.exp(glv / 2) * eps_graph
        return zt, zg, kl_t + kl_g

    zt_ref, zg_ref, kl_expect = ref()
    assert jnp.allclose(tree_z, zt_ref, atol=1e-2, rtol=1e-2), "tree rsample mismatch"
    assert jnp.allclose(graph_z, zg_ref, atol=1e-2, rtol=1e-2), "graph rsample mismatch"
    assert jnp.allclose(kl_div, kl_expect, atol=5e-2, rtol=2e-2), "kl mismatch"

    print("KERNEL_OK")
</pallas_src>

<mosaic_0001>
module attributes {stable_mosaic.version = 11 : i64} {
  func.func @_segment_pool_kernel(%arg0: i32, %arg1: i32, %arg2: i32, %arg3: memref<8x128xbf16, #tpu.memory_space<vmem>>, %arg4: memref<128x256xbf16, #tpu.memory_space<vmem>>, %arg5: memref<8x1xf32, #tpu.memory_space<vmem>>, %arg6: memref<8x256xf32, #tpu.memory_space<vmem>>, %arg7: memref<8x256xf32, #tpu.memory_space<vmem>>) attributes {dimension_semantics = [#tpu.dimension_semantics<parallel>, #tpu.dimension_semantics<parallel>, #tpu.dimension_semantics<arbitrary>], iteration_bounds = array<i64: 1, 1, 1>, scalar_prefetch = 0 : i64, scratch_operands = 1 : i64, tpu.core_type = #tpu.core_type<tc>, window_params = [{transform_indices = @transform_0, window_bounds = array<i64: 8, 128>}, {transform_indices = @transform_1, window_bounds = array<i64: 128, 256>}, {transform_indices = @transform_2, window_bounds = array<i64: 8, 1>}, {transform_indices = @transform_3, window_bounds = array<i64: 8, 256>}]} {
    %c0_i32 = arith.constant 0 : i32
    %0 = arith.cmpi eq, %arg2, %c0_i32 : i32
    %1 = arith.extui %0 : i1 to i32
    %c0_i32_0 = arith.constant 0 : i32
    %2 = arith.cmpi ne, %1, %c0_i32_0 : i32
    scf.if %2 {
      %cst_10 = arith.constant 0.000000e+00 : f32
      %12 = vector.broadcast %cst_10 : f32 to vector<8x256xf32>
      %c0_11 = arith.constant 0 : index
      %c0_12 = arith.constant 0 : index
      %13 = vector.load %arg7[%c0_11, %c0_12] : memref<8x256xf32, #tpu.memory_space<vmem>>, vector<8x256xf32>
      tpu.vector_store %arg7[%c0_11, %c0_12], %12 {strides = array<i32>} : memref<8x256xf32, #tpu.memory_space<vmem>>, vector<8x256xf32>,
    } else {
    }
    %c0 = arith.constant 0 : index
    %c0_1 = arith.constant 0 : index
    %3 = vector.load %arg7[%c0, %c0_1] : memref<8x256xf32, #tpu.memory_space<vmem>>, vector<8x256xf32>
    %c0_2 = arith.constant 0 : index
    %c0_3 = arith.constant 0 : index
    %4 = vector.load %arg3[%c0_2, %c0_3] : memref<8x128xbf16, #tpu.memory_space<vmem>>, vector<8x128xbf16>
    %c0_4 = arith.constant 0 : index
    %c0_5 = arith.constant 0 : index
    %5 = vector.load %arg4[%c0_4, %c0_5] : memref<128x256xbf16, #tpu.memory_space<vmem>>, vector<128x256xbf16>
    %cst = arith.constant dense<0.000000e+00> : vector<8x256xf32>
    %6 = tpu.matmul %4, %5, %cst {dimension_numbers = #tpu.dot_dimension_numbers<[1], [0], [0], [1], [0, 0, 1, 1], [], []>} : vector<8x128xbf16>, vector<128x256xbf16>, vector<8x256xf32> -> vector<8x256xf32>
    %7 = arith.addf %3, %6 : vector<8x256xf32>
    %c0_6 = arith.constant 0 : index
    %c0_7 = arith.constant 0 : index
    %8 = vector.load %arg7[%c0_6, %c0_7] : memref<8x256xf32, #tpu.memory_space<vmem>>, vector<8x256xf32>
    tpu.vector_store %arg7[%c0_6, %c0_7], %7 {strides = array<i32>} : memref<8x256xf32, #tpu.memory_space<vmem>>, vector<8x256xf32>,
    %c0_i32_8 = arith.constant 0 : i32
    %9 = arith.cmpi eq, %arg2, %c0_i32_8 : i32
    %10 = arith.extui %9 : i1 to i32
    %c0_i32_9 = arith.constant 0 : i32
    %11 = arith.cmpi ne, %10, %c0_i32_9 : i32
    scf.if %11 {
      %c0_10 = arith.constant 0 : index
      %c0_11 = arith.constant 0 : index
      %12 = vector.load %arg7[%c0_10, %c0_11] : memref<8x256xf32, #tpu.memory_space<vmem>>, vector<8x256xf32>
      %c0_12 = arith.constant 0 : index
      %c0_13 = arith.constant 0 : index
      %13 = vector.load %arg5[%c0_12, %c0_13] : memref<8x1xf32, #tpu.memory_space<vmem>>, vector<8x1xf32>
      %14 = vector.broadcast %13 : vector<8x1xf32> to vector<8x256xf32>
      %15 = arith.mulf %12, %14 : vector<8x256xf32>
      %c0_14 = arith.constant 0 : index
      %c0_15 = arith.constant 0 : index
      %16 = vector.load %arg6[%c0_14, %c0_15] : memref<8x256xf32, #tpu.memory_space<vmem>>, vector<8x256xf32>
      tpu.vector_store %arg6[%c0_14, %c0_15], %15 {strides = array<i32>} : memref<8x256xf32, #tpu.memory_space<vmem>>, vector<8x256xf32>,
    } else {
    }
    return
  }
  func.func @transform_0(%arg0: i32, %arg1: i32, %arg2: i32) -> (i32, i32) {
    %c0_i32 = arith.constant 0 : i32
    return %arg0, %arg2 : i32, i32
  }
  func.func @transform_1(%arg0: i32, %arg1: i32, %arg2: i32) -> (i32, i32) {
    %c0_i32 = arith.constant 0 : i32
    return %arg2, %arg1 : i32, i32
  }
  func.func @transform_2(%arg0: i32, %arg1: i32, %arg2: i32) -> (i32, i32) {
    %c0_i32 = arith.constant 0 : i32
    %c0_i32_0 = arith.constant 0 : i32
    return %arg0, %c0_i32 : i32, i32
  }
  func.func @transform_3(%arg0: i32, %arg1: i32, %arg2: i32) -> (i32, i32) {
    %c0_i32 = arith.constant 0 : i32
    return %arg0, %arg1 : i32, i32
  }
}

</mosaic_0001>

<llo_original>
// kernel: tpu_custom_call.1
$region0: #{tpu_custom_call.1}
  #allocation0 [shape = 'u32[]', space=smem, size = 0x4, offset = 0x4, fixed_abs, tag = 'smem constant byte address 0x4 - core index']
  #allocation1 [shape = 'u32[144,128]{1,0:T(1,128)}', space=vmem, size = 0x12000, scoped, tag = 'internal scratch']
  #allocation2 [shape = 'f32[8,256]{1,0:T(8,128)}', space=vmem, size = 0x2000, scoped, tag = 'scratch operand']
  %s0 = inlined_call_operand.vmem [shape: bf16[8,128], index: 0, kind: input, shape index: {}]
  %s1 = inlined_call_operand.hbm [shape: bf16[128,256], index: 1, kind: input, shape index: {}]
  %s2 = inlined_call_operand.vmem [shape: f32[8,1], index: 2, kind: input, shape index: {}]
  %s3 = inlined_call_operand.hbm [shape: f32[8,256], index: 3, kind: output, shape index: {}]
  %s4 = sld [smem:[#allocation0]]
  $region34: #{tpu_custom_call.1} parent=0
    _
  %s6 = ssub.s32 1, %s4
  %s7 = scalar_select 0, %s6, %s4
  $region1: #{tpu_custom_call.1} parent=0
    #allocation3 [shape = 'u8[65536]{0}', space=vmem, size = 0x10000, scoped, tag = 'input window, operand 1, single buffered']
    #allocation4 [shape = 's32[1]{0}', space=sflag, size = 0x4, scoped, tag = 'scoped memory for tpu_custom_call.1']
    #allocation5 [shape = 's32[1]{0}', space=sflag, size = 0x4, scoped, tag = 'scoped memory for tpu_custom_call.1']
    #allocation6 [shape = 'u8[8192]{0}', space=vmem, size = 0x2000, scoped, tag = 'output window, operand 0, single buffered']
    %8 = vsyncpa [#allocation4], 0
    %9 = vsyncpa [#allocation5], 0
    // Predicated region
    $region2: #{tpu_custom_call.1} parent=1 // pred_check
      _
    $region3: #{tpu_custom_call.1} parent=1 // pred_check_branch
      %11 = sbr.rel (0) target = $region5
    $region4: #{tpu_custom_call.1} parent=1 // pred_region
      _
    $region5: #{tpu_custom_call.1} parent=1 // pred_fallthru
      _
    // Predicated region
    $region6: #{tpu_custom_call.1} parent=1 // pred_check
      _
    $region7: #{tpu_custom_call.1} parent=1 // pred_check_branch
      %13 = sbr.rel (0) target = $region9
    $region8: #{tpu_custom_call.1} parent=1 // pred_region
      %s15 = ssub.s32 2048, 2048
      %16 = vsyncadd [#allocation4], %s15
      %s17 = sshll.u32 [#allocation3], 4
      %s18 = int_to_ptr.vmem [resolvable:$true] %s17
      %23 = dma.hbm_to_vmem [thread:$0]  %s1, 2048, %s18, [#allocation4], 128, 128, 8
    $region9: #{tpu_custom_call.1} parent=1 // pred_fallthru
      _
    // Predicated region
    $region10: #{tpu_custom_call.1} parent=1 // pred_check
      _
    $region11: #{tpu_custom_call.1} parent=1 // pred_check_branch
      %25 = sbr.rel (0) target = $region13
    $region12: #{tpu_custom_call.1} parent=1 // pred_region
      _
    $region13: #{tpu_custom_call.1} parent=1 // pred_fallthru
      _
    // Predicated region
    $region14: #{tpu_custom_call.1} parent=1 // pred_check
      _
    $region15: #{tpu_custom_call.1} parent=1 // pred_check_branch
      %27 = sbr.rel (0) target = $region17
    $region16: #{tpu_custom_call.1} parent=1 // pred_region
      %28 = dma.done [#allocation4], 2048
    $region17: #{tpu_custom_call.1} parent=1 // pred_fallthru
      _
    %p30 = scmp.eq.s32.totalorder 0, 0
    // Predicated region
    $region18: #{tpu_custom_call.1} parent=1 // pred_check
      %p31 = pneg %p30
    $region19: #{tpu_custom_call.1} parent=1 // pred_check_branch
      %33 = sbr.rel (%p31) target = $region21
    $region20: #{tpu_custom_call.1} parent=1 // pred_region
      %34 = vst [vmem:[#allocation2] sm:$0xff] 0.0
      %35 = vst [vmem:[#allocation2 + $0x8] sm:$0xff] 0.0
    $region21: #{tpu_custom_call.1} parent=1 // pred_fallthru
      _
    %v36 = vld [vmem:[#allocation2] sm:$0xff]
    %v37 = vld [vmem:[#allocation2 + $0x8] sm:$0xff]
    %v38 = vld [vmem:[%s0] sm:$0xf]
    %v39 = vld [vmem:[#allocation3] sm:$0xff]
    %v40 = vld [vmem:[#allocation3 + $0x8] sm:$0xff]
    %v41 = vld [vmem:[#allocation3 + $0x10] sm:$0xff]
    %v42 = vld [vmem:[#allocation3 + $0x18] sm:$0xff]
    %v43 = vld [vmem:[#allocation3 + $0x20] sm:$0xff]
    %v44 = vld [vmem:[#allocation3 + $0x28] sm:$0xff]
    %v45 = vld [vmem:[#allocation3 + $0x30] sm:$0xff]
    %v46 = vld [vmem:[#allocation3 + $0x38] sm:$0xff]
    %v47 = vld [vmem:[#allocation3 + $0x40] sm:$0xff]
    %v48 = vld [vmem:[#allocation3 + $0x48] sm:$0xff]
    %v49 = vld [vmem:[#allocation3 + $0x50] sm:$0xff]
    %v50 = vld [vmem:[#allocation3 + $0x58] sm:$0xff]
    %v51 = vld [vmem:[#allocation3 + $0x60] sm:$0xff]
    %v52 = vld [vmem:[#allocation3 + $0x68] sm:$0xff]
    %v53 = vld [vmem:[#allocation3 + $0x70] sm:$0xff]
    %v54 = vld [vmem:[#allocation3 + $0x78] sm:$0xff]
    %v71 = vunpack.c.l.b16 %v39
    %v72 = vunpack.c.h.b16 %v39
    %v73 = vunpack.c.l.b16 %v40
    %v74 = vunpack.c.h.b16 %v40
    %v75 = vunpack.c.l.b16 %v41
    %v76 = vunpack.c.h.b16 %v41
    %v77 = vunpack.c.l.b16 %v42
    %v78 = vunpack.c.h.b16 %v42
    %v79 = vunpack.c.l.b16 %v43
    %v80 = vunpack.c.h.b16 %v43
    %v81 = vunpack.c.l.b16 %v44
    %v82 = vunpack.c.h.b16 %v44
    %v83 = vunpack.c.l.b16 %v45
    %v84 = vunpack.c.h.b16 %v45
    %v85 = vunpack.c.l.b16 %v46
    %v86 = vunpack.c.h.b16 %v46
    %v87 = vunpack.c.l.b16 %v47
    %v88 = vunpack.c.h.b16 %v47
    %v89 = vunpack.c.l.b16 %v48
    %v90 = vunpack.c.h.b16 %v48
    %v91 = vunpack.c.l.b16 %v49
    %v92 = vunpack.c.h.b16 %v49
    %v93 = vunpack.c.l.b16 %v50
    %v94 = vunpack.c.h.b16 %v50
    %v95 = vunpack.c.l.b16 %v51
    %v96 = vunpack.c.h.b16 %v51
    %v97 = vunpack.c.l.b16 %v52
    %v98 = vunpack.c.h.b16 %v52
    %v99 = vunpack.c.l.b16 %v53
    %v100 = vunpack.c.h.b16 %v53
    %v101 = vunpack.c.l.b16 %v54
    %v102 = vunpack.c.h.b16 %v54
    %v103 = vpack.c.b16 %v73, %v71
    %v104 = vpack.c.b16 %v74, %v72
    %v105 = vpack.c.b16 %v77, %v75
    %v106 = vpack.c.b16 %v78, %v76
    %v107 = vpack.c.b16 %v81, %v79
    %v108 = vpack.c.b16 %v82, %v80
    %v109 = vpack.c.b16 %v85, %v83
    %v110 = vpack.c.b16 %v86, %v84
    %v111 = vpack.c.b16 %v89, %v87
    %v112 = vpack.c.b16 %v90, %v88
    %v113 = vpack.c.b16 %v93, %v91
    %v114 = vpack.c.b16 %v94, %v92
    %v115 = vpack.c.b16 %v97, %v95
    %v116 = vpack.c.b16 %v98, %v96
    %v117 = vpack.c.b16 %v101, %v99
    %v118 = vpack.c.b16 %v102, %v100
    %135 = vmatprep.subr.bf16.mxu0 %v118
    %136 = vmatpush1.bf16.msra.mxu0 %v117
    %137 = vmatprep.subr.bf16.mxu0 %v116
    %138 = vmatpush1.bf16.msra.mxu0 %v115
    %139 = vmatprep.subr.bf16.mxu0 %v114
    %140 = vmatpush1.bf16.msra.mxu0 %v113
    %141 = vmatprep.subr.bf16.mxu0 %v112
    %142 = vmatpush1.bf16.msra.mxu0 %v111
    %143 = vmatprep.subr.bf16.mxu0 %v110
    %144 = vmatpush1.bf16.msra.mxu0 %v109
    %145 = vmatprep.subr.bf16.mxu0 %v108
    %146 = vmatpush1.bf16.msra.mxu0 %v107
    %147 = vmatprep.subr.bf16.mxu0 %v106
    %148 = vmatpush1.bf16.msra.mxu0 %v105
    %149 = vmatprep.subr.bf16.mxu0 %v104
    %150 = vmatpush1.bf16.msra.mxu0 %v103
    %151 = vmatprep.subr.bf16.mxu0 0
    %152 = vmatpush2.bf16.msra.mxu0 0
    %153 = vmatprep.subr.bf16.mxu0 0
    %154 = vmatpush2.bf16.msra.mxu0 0
    %155 = vmatprep.subr.bf16.mxu0 0
    %156 = vmatpush2.bf16.msra.mxu0 0
    %157 = vmatprep.subr.bf16.mxu0 0
    %158 = vmatpush2.bf16.msra.mxu0 0
    %159 = vmatprep.subr.bf16.mxu0 0
    %160 = vmatpush2.bf16.msra.mxu0 0
    %161 = vmatprep.subr.bf16.mxu0 0
    %162 = vmatpush2.bf16.msra.mxu0 0
    %163 = vmatprep.subr.bf16.mxu0 0
    %164 = vmatpush2.bf16.msra.mxu0 0
    %165 = vmatprep.subr.bf16.mxu0 0
    %166 = vmatpush2.bf16.msra.mxu0 0
    %167 = vmatprep.mubr.bf16.mxu0 0
    %168 = vmatmul.mubr.bf16.gmra.mxu0 %v38
    %v169 = vpop.f32.mrf.mxu0
    %v170 = vadd.f32 0.0, %v169
    %v171 = vpop.f32.mrf.mxu0
    %v172 = vadd.f32 0.0, %v171
    %v173 = vpop.f32.mrf.mxu0
    %v174 = vpop.f32.mrf.mxu0
    %175 = vdwg.mxu0
    %v176 = vadd.f32 %v36, %v170
    %v177 = vadd.f32 %v37, %v172
    %178 = vst [vmem:[#allocation2] sm:$0xff] %v176
    %179 = vst [vmem:[#allocation2 + $0x8] sm:$0xff] %v177
    // Predicated region
    $region22: #{tpu_custom_call.1} parent=1 // pred_check
      %p180 = pneg %p30
    $region23: #{tpu_custom_call.1} parent=1 // pred_check_branch
      %182 = sbr.rel (%p180) target = $region25
    $region24: #{tpu_custom_call.1} parent=1 // pred_region
      %v183 = vld [vmem:[#allocation2] sm:$0xff]
      %v184 = vld [vmem:[#allocation2 + $0x8] sm:$0xff]
      %v185 = vld [vmem:[%s2] sm:$0xff]
      %187 = vset.pattern.permute.xlu0 0
      %188 = vperm.xlu0 %187, %v185
      %v189 = vpop.permute.xlu0 %188
      %v191 = vmul.f32 %v183, %v189
      %v192 = vmul.f32 %v184, %v189
      %193 = vst [vmem:[#allocation6] sm:$0xff] %v191
      %194 = vst [vmem:[#allocation6 + $0x8] sm:$0xff] %v192
    $region25: #{tpu_custom_call.1} parent=1 // pred_fallthru
      _
    // Predicated region
    $region26: #{tpu_custom_call.1} parent=1 // pred_check
      _
    $region27: #{tpu_custom_call.1} parent=1 // pred_check_branch
      %196 = sbr.rel (0) target = $region29
    $region28: #{tpu_custom_call.1} parent=1 // pred_region
      %s198 = ssub.s32 256, 256
      %199 = vsyncadd [#allocation5], %s198
      %s201 = sshll.u32 [#allocation6], 4
      %s202 = int_to_ptr.vmem [resolvable:$true] %s201
      %204 = dma.vmem_to_hbm [thread:$0]  %s202, 256, %s3, [#allocation5]
    $region29: #{tpu_custom_call.1} parent=1 // pred_fallthru
      _
    // Predicated region
    $region30: #{tpu_custom_call.1} parent=1 // pred_check
      _
    $region31: #{tpu_custom_call.1} parent=1 // pred_check_branch
      %206 = sbr.rel (0) target = $region33
    $region32: #{tpu_custom_call.1} parent=1 // pred_region
      %207 = dma.done [#allocation5], 256
    $region33: #{tpu_custom_call.1} parent=1 // pred_fallthru
      _
    %208 = vsyncpa [#allocation4], 1
    %209 = vsyncpa [#allocation5], 1

</llo_original>
